<compile_context>
chip_gen: v5e
topology: v5e:2x2
jax: 0.10.0
libtpu: 0.0.40
codegen_flags: <defaults>
</compile_context>

<pallas_src>
import jax
import jax.numpy as jnp
from jax.experimental import pallas as pl
from jax.experimental.pallas import tpu as pltpu


def _domain_attention_kernel(cat_ref, xt_ref, segy_ref, phit_ref, bias_ref, out_ref):
    cat = cat_ref[...]        # (M, D)  resident
    xt = xt_ref[...]          # (D, TN) current batch tile (already transposed)
    seg_y = segy_ref[...]     # (S, M)  resident
    phi_t = phit_ref[...]     # (S, D)  resident
    bias = bias_ref[0]        # scalar from SMEM

    # con[m, n] = <cat[m], x[n]>   (the stacked torch.mm(i, x.T) loop)
    con = jnp.dot(cat, xt, preferred_element_type=jnp.float32)            # (M, TN)

    # F.normalize(con, p=4, dim=0): per-column L4 norm, clamped at 1e-12.
    c2 = con * con
    norm4 = jnp.sqrt(jnp.sqrt(jnp.sum(c2 * c2, axis=0, keepdims=True)))   # (1, TN)
    con = con * pl.reciprocal(jnp.maximum(norm4, 1e-12), approx=True)

    # Softmax over dim 0 (across the M rows, per column).
    con = con - jnp.max(con, axis=0, keepdims=True)
    e = jnp.exp(con)
    psi = e * pl.reciprocal(jnp.sum(e, axis=0, keepdims=True), approx=True)  # (M, TN)

    # theta_t[s, n] = exp(<phi_s, x[n]>)   (torch.exp(torch.mm(x, phi_src)).T)
    theta_t = jnp.exp(jnp.dot(phi_t, xt, preferred_element_type=jnp.float32))  # (S, TN)
    # NOTE: theta / sum_src ("theta_matrix") is computed by the PyTorch code
    # but never used, so it is intentionally omitted here.

    # z[s, n] = sum_{r in chunk s} y[r] * psi[r, n]
    z = jnp.dot(seg_y, psi, preferred_element_type=jnp.float32)           # (S, TN)

    # sum_matrix[n] = sum_s theta_s[n] * z[s, n] + bias
    out_ref[...] = jnp.sum(theta_t * z, axis=0, keepdims=True) + bias     # (1, TN)


def domain_attention_forward(batch_x, cat, y, phi, bias, source_size, block_n=None):
    """Pallas implementation of DomainAttention.forward.

    batch_x : (N, D) f32
    cat     : (M, D) f32   (len(cat) must equal len(y); M % source_size == 0)
    y       : (M,)   f32
    phi     : (D, S) f32   stacked phi_src params (each column is one (D,1) param)
    bias    : (1,)   f32
    returns : list with one (N,) array  (matches `all_y_hat`)
    """
    N, D = batch_x.shape
    M = cat.shape[0]
    S = source_size
    assert M % S == 0, "len(cat) must chunk evenly into source_size pieces"
    chunk = M // S

    # --- choose a lane-dense tile of the batch dim and pad N ----------------
    lane = 128
    n_lane = ((N + lane - 1) // lane) * lane
    if block_n is None:
        # v7x (64 MiB VMEM): keep tiles modest; v6e/v5e: 512 amortizes grid
        # overhead and fills the MXU. Small N just gets one 128-wide tile.
        block_n = min(512, n_lane)
    n_pad = ((N + block_n - 1) // block_n) * block_n
    grid_n = n_pad // block_n

    # Pre-transpose x so the kernel sees standard (M,D)@(D,TN) MXU shapes.
    # Zero-padded columns produce finite, independent garbage that is sliced off.
    x_t = jnp.pad(batch_x.astype(jnp.float32).T, ((0, 0), (0, n_pad - N)))

    # seg_y[s, m] = y[m] if column m belongs to chunk s else 0 (vectorized).
    row = jax.lax.broadcasted_iota(jnp.int32, (S, M), 0)
    col_chunk = jax.lax.broadcasted_iota(jnp.int32, (S, M), 1) // chunk
    seg_y = jnp.where(row == col_chunk, y.astype(jnp.float32)[None, :], 0.0)

    cat32 = cat.astype(jnp.float32)
    phi_t = jnp.asarray(phi, jnp.float32).T              # (S, D)
    bias1d = jnp.asarray(bias, jnp.float32).reshape(1)   # scalar -> SMEM
    # TODO(synk): optionally cast cat / x_t to bfloat16 for the dominant GEMM
    # (f32 accumulation kept) once the accuracy budget is confirmed.

    # Rough VMEM estimate: resident weights + double-buffered x/out tiles +
    # the (M, TN) / (S, TN) f32 intermediates. Raise the scoped limit only if
    # needed, capped to leave headroom on v7x's 64 MiB VMEM.
    est_vmem = 4 * (M * D + S * M + S * D
                    + 2 * D * block_n + 2 * block_n
                    + 6 * M * block_n + 4 * S * block_n)
    cp_kwargs = dict(dimension_semantics=("parallel",))
    if est_vmem > 32 * 1024 * 1024:
        cp_kwargs["vmem_limit_bytes"] = min(int(est_vmem * 5 // 4), 64 * 1024 * 1024)

    cost = pl.CostEstimate(
        flops=2 * n_pad * (M * D + S * D + S * M),
        transcendentals=n_pad * (M + S),
        bytes_accessed=4 * (D * n_pad + M * D + S * M + S * D + n_pad + 1),
    )

    out = pl.pallas_call(
        _domain_attention_kernel,
        out_shape=jax.ShapeDtypeStruct((1, n_pad), jnp.float32),
        grid=(grid_n,),
        in_specs=[
            pl.BlockSpec((M, D), lambda i: (0, 0)),            # cat   (resident)
            pl.BlockSpec((D, block_n), lambda i: (0, i)),      # x_t   (tiled over N)
            pl.BlockSpec((S, M), lambda i: (0, 0)),            # seg_y (resident)
            pl.BlockSpec((S, D), lambda i: (0, 0)),            # phi_t (resident)
            pl.BlockSpec(memory_space=pltpu.MemorySpace.SMEM),  # bias scalar
        ],
        out_specs=pl.BlockSpec((1, block_n), lambda i: (0, i)),
        compiler_params=pltpu.CompilerParams(**cp_kwargs),
        cost_estimate=cost,
    )(cat32, x_t, seg_y, phi_t, bias1d)

    return [out.reshape(n_pad)[:N]]


def _reference(batch_x, cat, y, phi, bias, source_size):
    """Plain-JAX re-implementation of the PyTorch forward (for verification)."""
    con = cat @ batch_x.T                                      # (M, N)
    norm = jnp.sum(con ** 4, axis=0, keepdims=True) ** 0.25
    con = con / jnp.maximum(norm, 1e-12)
    psi = jax.nn.softmax(con, axis=0)                          # (M, N)
    theta = jnp.exp(batch_x @ phi)                             # (N, S)
    M = cat.shape[0]
    chunk = M // source_size
    out = jnp.zeros((batch_x.shape[0],), jnp.float32)
    for s in range(source_size):
        psi_s = psi[s * chunk:(s + 1) * chunk]                 # (chunk, N)
        y_s = y[s * chunk:(s + 1) * chunk]                     # (chunk,)
        a = y_s[:, None] * psi_s
        temp = a * theta[:, s][None, :]
        out = out + jnp.sum(temp, axis=0)
    return out + bias[0]


if __name__ == "__main__":
    # Small, deterministic problem sizes consistent with the module's forward:
    #   N = batch size, D = embedding_dim, S = source_size, M = len(cat) = len(y)
    N, D, S, M = 16, 32, 2, 8

    key = jax.random.PRNGKey(0)
    k_x, k_c, k_y, k_p = jax.random.split(key, 4)

    batch_x = jax.random.normal(k_x, (N, D), jnp.float32)
    cat = jax.random.normal(k_c, (M, D), jnp.float32)
    y = jax.random.randint(k_y, (M,), 0, 3).astype(jnp.float32)  # label_size=3

    # Deterministic xavier_uniform_ init of each (D, 1) phi_src, stacked -> (D, S)
    bound = (6.0 / (D + 1)) ** 0.5
    phi = jax.random.uniform(k_p, (D, S), jnp.float32, minval=-bound, maxval=bound)
    bias = jnp.zeros((1,), jnp.float32)  # nn.Parameter(torch.Tensor([0]))

    all_y_hat = domain_attention_forward(batch_x, cat, y, phi, bias, S)
    y_hat = jax.block_until_ready(all_y_hat[0])

    ref = _reference(batch_x, cat, y, phi, bias, S)
    assert y_hat.shape == (N,)
    # Tolerance slightly relaxed because the kernel uses EUP approximate
    # reciprocals for the L4-norm and softmax denominators.
    rel = jnp.max(jnp.abs(y_hat - ref) / jnp.maximum(jnp.abs(ref), 1e-2))
    assert float(rel) < 2e-2, (float(rel), y_hat, ref)

    print("KERNEL_OK")
</pallas_src>

<mosaic_0001>
module attributes {stable_mosaic.version = 11 : i64} {
  func.func @_domain_attention_kernel(%arg0: i32, %arg1: memref<8x32xf32, #tpu.memory_space<vmem>>, %arg2: memref<32x128xf32, #tpu.memory_space<vmem>>, %arg3: memref<2x8xf32, #tpu.memory_space<vmem>>, %arg4: memref<2x32xf32, #tpu.memory_space<vmem>>, %arg5: memref<1xf32, #tpu.memory_space<smem>>, %arg6: memref<1x128xf32, #tpu.memory_space<vmem>>) attributes {dimension_semantics = [#tpu.dimension_semantics<parallel>], iteration_bounds = array<i64: 1>, scalar_prefetch = 0 : i64, scratch_operands = 0 : i64, tpu.core_type = #tpu.core_type<tc>, window_params = [{pipeline_mode = #tpu.pipeline_mode<synchronous>, transform_indices = @transform_0, window_bounds = array<i64: 8, 32>}, {transform_indices = @transform_1, window_bounds = array<i64: 32, 128>}, {pipeline_mode = #tpu.pipeline_mode<synchronous>, transform_indices = @transform_2, window_bounds = array<i64: 2, 8>}, {pipeline_mode = #tpu.pipeline_mode<synchronous>, transform_indices = @transform_3, window_bounds = array<i64: 2, 32>}, {transform_indices = @transform_4, window_bounds = array<i64: 1>}, {transform_indices = @transform_5, window_bounds = array<i64: 1, 128>}]} {
    %c0 = arith.constant 0 : index
    %c0_0 = arith.constant 0 : index
    %0 = vector.load %arg1[%c0, %c0_0] : memref<8x32xf32, #tpu.memory_space<vmem>>, vector<8x32xf32>
    %c0_1 = arith.constant 0 : index
    %c0_2 = arith.constant 0 : index
    %1 = vector.load %arg2[%c0_1, %c0_2] : memref<32x128xf32, #tpu.memory_space<vmem>>, vector<32x128xf32>
    %c0_3 = arith.constant 0 : index
    %c0_4 = arith.constant 0 : index
    %2 = vector.load %arg3[%c0_3, %c0_4] : memref<2x8xf32, #tpu.memory_space<vmem>>, vector<2x8xf32>
    %c0_5 = arith.constant 0 : index
    %c0_6 = arith.constant 0 : index
    %3 = vector.load %arg4[%c0_5, %c0_6] : memref<2x32xf32, #tpu.memory_space<vmem>>, vector<2x32xf32>
    %c0_7 = arith.constant 0 : index
    %4 = memref.load %arg5[%c0_7] : memref<1xf32, #tpu.memory_space<smem>>
    %cst = arith.constant dense<0.000000e+00> : vector<8x128xf32>
    %5 = tpu.matmul %0, %1, %cst {dimension_numbers = #tpu.dot_dimension_numbers<[1], [0], [0], [1], [0, 0, 1, 1], [], []>} : vector<8x32xf32>, vector<32x128xf32>, vector<8x128xf32> -> vector<8x128xf32>
    %6 = arith.mulf %5, %5 : vector<8x128xf32>
    %7 = arith.mulf %6, %6 : vector<8x128xf32>
    %cst_8 = arith.constant dense<0.000000e+00> : vector<128xf32>
    %8 = vector.multi_reduction <add>, %7, %cst_8 [0] : vector<8x128xf32> to vector<128xf32>
    %9 = vector.shape_cast %8 : vector<128xf32> to vector<1x128xf32>
    %10 = math.sqrt %9 : vector<1x128xf32>
    %11 = math.sqrt %10 : vector<1x128xf32>
    %cst_9 = arith.constant 9.99999996E-13 : f32
    %12 = vector.broadcast %cst_9 : f32 to vector<1x128xf32>
    %13 = arith.maximumf %11, %12 : vector<1x128xf32>
    %14 = tpu.reciprocal %13 {approx = true} : vector<1x128xf32> -> vector<1x128xf32>
    %15 = vector.broadcast %14 : vector<1x128xf32> to vector<8x128xf32>
    %16 = arith.mulf %5, %15 : vector<8x128xf32>
    %cst_10 = arith.constant dense<0xFF800000> : vector<128xf32>
    %17 = vector.multi_reduction <maximumf>, %16, %cst_10 [0] : vector<8x128xf32> to vector<128xf32>
    %18 = vector.shape_cast %17 : vector<128xf32> to vector<1x128xf32>
    %19 = vector.broadcast %18 : vector<1x128xf32> to vector<8x128xf32>
    %20 = arith.subf %16, %19 : vector<8x128xf32>
    %21 = math.exp %20 : vector<8x128xf32>
    %cst_11 = arith.constant dense<0.000000e+00> : vector<128xf32>
    %22 = vector.multi_reduction <add>, %21, %cst_11 [0] : vector<8x128xf32> to vector<128xf32>
    %23 = vector.shape_cast %22 : vector<128xf32> to vector<1x128xf32>
    %24 = tpu.reciprocal %23 {approx = true} : vector<1x128xf32> -> vector<1x128xf32>
    %25 = vector.broadcast %24 : vector<1x128xf32> to vector<8x128xf32>
    %26 = arith.mulf %21, %25 : vector<8x128xf32>
    %cst_12 = arith.constant dense<0.000000e+00> : vector<2x128xf32>
    %27 = tpu.matmul %3, %1, %cst_12 {dimension_numbers = #tpu.dot_dimension_numbers<[1], [0], [0], [1], [0, 0, 1, 1], [], []>} : vector<2x32xf32>, vector<32x128xf32>, vector<2x128xf32> -> vector<2x128xf32>
    %28 = math.exp %27 : vector<2x128xf32>
    %cst_13 = arith.constant dense<0.000000e+00> : vector<2x128xf32>
    %29 = tpu.matmul %2, %26, %cst_13 {dimension_numbers = #tpu.dot_dimension_numbers<[1], [0], [0], [1], [0, 0, 1, 1], [], []>} : vector<2x8xf32>, vector<8x128xf32>, vector<2x128xf32> -> vector<2x128xf32>
    %30 = arith.mulf %28, %29 : vector<2x128xf32>
    %cst_14 = arith.constant dense<0.000000e+00> : vector<128xf32>
    %31 = vector.multi_reduction <add>, %30, %cst_14 [0] : vector<2x128xf32> to vector<128xf32>
    %32 = vector.shape_cast %31 : vector<128xf32> to vector<1x128xf32>
    %33 = vector.broadcast %4 : f32 to vector<1x128xf32>
    %34 = arith.addf %32, %33 : vector<1x128xf32>
    %c0_15 = arith.constant 0 : index
    %c0_16 = arith.constant 0 : index
    %35 = vector.load %arg6[%c0_15, %c0_16] : memref<1x128xf32, #tpu.memory_space<vmem>>, vector<1x128xf32>
    tpu.vector_store %arg6[%c0_15, %c0_16], %34 {strides = array<i32>} : memref<1x128xf32, #tpu.memory_space<vmem>>, vector<1x128xf32>,
    return
  }
  func.func @transform_0(%arg0: i32) -> (i32, i32) {
    %c0_i32 = arith.constant 0 : i32
    %c0_i32_0 = arith.constant 0 : i32
    %c0_i32_1 = arith.constant 0 : i32
    return %c0_i32, %c0_i32_0 : i32, i32
  }
  func.func @transform_1(%arg0: i32) -> (i32, i32) {
    %c0_i32 = arith.constant 0 : i32
    %c0_i32_0 = arith.constant 0 : i32
    return %c0_i32, %arg0 : i32, i32
  }
  func.func @transform_2(%arg0: i32) -> (i32, i32) {
    %c0_i32 = arith.constant 0 : i32
    %c0_i32_0 = arith.constant 0 : i32
    %c0_i32_1 = arith.constant 0 : i32
    return %c0_i32, %c0_i32_0 : i32, i32
  }
  func.func @transform_3(%arg0: i32) -> (i32, i32) {
    %c0_i32 = arith.constant 0 : i32
    %c0_i32_0 = arith.constant 0 : i32
    %c0_i32_1 = arith.constant 0 : i32
    return %c0_i32, %c0_i32_0 : i32, i32
  }
  func.func @transform_4(%arg0: i32) -> i32 {
    %c0_i32 = arith.constant 0 : i32
    %c0_i32_0 = arith.constant 0 : i32
    return %c0_i32 : i32
  }
  func.func @transform_5(%arg0: i32) -> (i32, i32) {
    %c0_i32 = arith.constant 0 : i32
    %c0_i32_0 = arith.constant 0 : i32
    return %c0_i32, %arg0 : i32, i32
  }
}

</mosaic_0001>

<llo_original>
// kernel: tpu_custom_call.1
$region0: #{tpu_custom_call.1}
  #allocation0 [shape = 'u32[]', space=smem, size = 0x4, offset = 0x4, fixed_abs, tag = 'smem constant byte address 0x4 - core index']
  #allocation1 [shape = 'u32[72,128]{1,0:T(1,128)}', space=vmem, size = 0x9000, scoped, tag = 'internal scratch']
  #allocation2 [shape = 'f32[1]{0:T(128)S(6)}', space=smem, size = 0x200, scoped, tag = 'scoped memory for tpu_custom_call.1']
  %s0 = inlined_call_operand.hbm [shape: f32[8,32], index: 0, kind: input, shape index: {}]
  %s1 = inlined_call_operand.hbm [shape: f32[32,128], index: 1, kind: input, shape index: {}]
  %s2 = inlined_call_operand.vmem [shape: f32[2,8], index: 2, kind: input, shape index: {}]
  %s3 = inlined_call_operand.vmem [shape: f32[2,32], index: 3, kind: input, shape index: {}]
  %s4 = inlined_call_operand.<no memory space> [shape: f32[1], index: 4, kind: input, shape index: {}]
  %s5 = inlined_call_operand.hbm [shape: f32[1,128], index: 5, kind: output, shape index: {}]
  %s6 = sld [smem:[#allocation0]]
  $region38: #{tpu_custom_call.1} parent=0
    _
  %s8 = ssub.s32 1, %s6
  %s9 = scalar_select 0, %s8, %s6
  %10 = sst [smem:[#allocation2]] %s4
  $region1: #{tpu_custom_call.1} parent=0
    #allocation3 [shape = 'u8[4096]{0}', space=vmem, size = 0x1000, scoped, tag = 'input window, operand 0, single buffered']
    #allocation4 [shape = 's32[1]{0}', space=sflag, size = 0x4, scoped, tag = 'scoped memory for tpu_custom_call.1']
    #allocation5 [shape = 's32[1]{0}', space=sflag, size = 0x4, scoped, tag = 'scoped memory for tpu_custom_call.1']
    #allocation6 [shape = 'u8[16384]{0}', space=vmem, size = 0x4000, scoped, tag = 'input window, operand 1, single buffered']
    #allocation7 [shape = 's32[1]{0}', space=sflag, size = 0x4, scoped, tag = 'scoped memory for tpu_custom_call.1']
    #allocation8 [shape = 'u8[512]{0}', space=vmem, size = 0x400, scoped, tag = 'output window, operand 0, single buffered']
    %11 = vsyncpa [#allocation4], 0
    %12 = vsyncpa [#allocation7], 0
    %13 = vsyncpa [#allocation5], 0
    // Predicated region
    $region2: #{tpu_custom_call.1} parent=1 // pred_check
      _
    $region3: #{tpu_custom_call.1} parent=1 // pred_check_branch
      %15 = sbr.rel (0) target = $region5
    $region4: #{tpu_custom_call.1} parent=1 // pred_region
      %17 = vsyncadd [#allocation4], 0
      %s19 = sshll.u32 %s0, 4
      %s20 = int_to_ptr.hbm [resolvable:$true] %s19
      %s21 = sshll.u32 [#allocation3], 4
      %s22 = int_to_ptr.vmem [resolvable:$true] %s21
      %24 = dma.hbm_to_vmem [thread:$0]  %s20, 128, %s22, [#allocation4]
    $region5: #{tpu_custom_call.1} parent=1 // pred_fallthru
      _
    // Predicated region
    $region6: #{tpu_custom_call.1} parent=1 // pred_check
      _
    $region7: #{tpu_custom_call.1} parent=1 // pred_check_branch
      %26 = sbr.rel (0) target = $region9
    $region8: #{tpu_custom_call.1} parent=1 // pred_region
      %28 = vsyncadd [#allocation7], 0
      %s29 = sshll.u32 %s1, 4
      %s30 = int_to_ptr.hbm [resolvable:$true] %s29
      %s31 = sshll.u32 [#allocation6], 4
      %s32 = int_to_ptr.vmem [resolvable:$true] %s31
      %37 = dma.hbm_to_vmem [thread:$0]  %s30, 512, %s32, [#allocation7], 128, 128, 8
    $region9: #{tpu_custom_call.1} parent=1 // pred_fallthru
      _
    // Predicated region
    $region10: #{tpu_custom_call.1} parent=1 // pred_check
      _
    $region11: #{tpu_custom_call.1} parent=1 // pred_check_branch
      %39 = sbr.rel (0) target = $region13
    $region12: #{tpu_custom_call.1} parent=1 // pred_region
      _
    $region13: #{tpu_custom_call.1} parent=1 // pred_fallthru
      _
    // Predicated region
    $region14: #{tpu_custom_call.1} parent=1 // pred_check
      _
    $region15: #{tpu_custom_call.1} parent=1 // pred_check_branch
      %41 = sbr.rel (0) target = $region17
    $region16: #{tpu_custom_call.1} parent=1 // pred_region
      _
    $region17: #{tpu_custom_call.1} parent=1 // pred_fallthru
      _
    // Predicated region
    $region18: #{tpu_custom_call.1} parent=1 // pred_check
      _
    $region19: #{tpu_custom_call.1} parent=1 // pred_check_branch
      %43 = sbr.rel (0) target = $region21
    $region20: #{tpu_custom_call.1} parent=1 // pred_region
      _
    $region21: #{tpu_custom_call.1} parent=1 // pred_fallthru
      _
    // Predicated region
    $region22: #{tpu_custom_call.1} parent=1 // pred_check
      _
    $region23: #{tpu_custom_call.1} parent=1 // pred_check_branch
      %45 = sbr.rel (0) target = $region25
    $region24: #{tpu_custom_call.1} parent=1 // pred_region
      %47 = dma.done [#allocation4], 128
    $region25: #{tpu_custom_call.1} parent=1 // pred_fallthru
      _
    // Predicated region
    $region26: #{tpu_custom_call.1} parent=1 // pred_check
      _
    $region27: #{tpu_custom_call.1} parent=1 // pred_check_branch
      %49 = sbr.rel (0) target = $region29
    $region28: #{tpu_custom_call.1} parent=1 // pred_region
      %51 = dma.done [#allocation7], 512
    $region29: #{tpu_custom_call.1} parent=1 // pred_fallthru
      _
    %v52 = vld [vmem:[#allocation3] sm:$0xff]
    %v53 = vld [vmem:[#allocation6] sm:$0xff]
    %v54 = vld [vmem:[#allocation6 + $0x8] sm:$0xff]
    %v55 = vld [vmem:[#allocation6 + $0x10] sm:$0xff]
    %v56 = vld [vmem:[#allocation6 + $0x18] sm:$0xff]
    %v57 = vld [vmem:[%s2] sm:$0x3]
    %v58 = vld [vmem:[%s3] sm:$0x3]
    %s59 = sld [smem:[#allocation2]]
    %vm60 = vcmask 261120
    %v62 = vsel %vm60, %v52, 0
    %64 = vmatpush.msra.mxu0 0.0
    %65 = vmatpush.msra.mxu0 0.0
    %66 = vmatpush.msra.mxu0 0.0
    %67 = vmatpush.msra.mxu0 0.0
    %68 = vmatpush.msra.mxu0 0.0
    %69 = vmatpush.msra.mxu0 0.0
    %70 = vmatpush.msra.mxu0 0.0
    %71 = vmatpush.msra.mxu0 0.0
    %72 = vmatpush.msra.mxu0 0.0
    %73 = vmatpush.msra.mxu0 0.0
    %74 = vmatpush.msra.mxu0 0.0
    %75 = vmatpush.msra.mxu0 0.0
    %76 = vmatpush.msra.mxu0 %v56
    %77 = vmatpush.msra.mxu0 %v55
    %78 = vmatpush.msra.mxu0 %v54
    %79 = vmatpush.msra.mxu0 %v53
    %80 = vmatmul.f32.gmra.mxu0 %v62
    %v81 = vpop.f32.mrf.mxu0
    %v82 = vadd.f32 0.0, %v81
    %83 = vdwg.mxu0
    %v84 = vmul.f32 %v82, %v82
    %v85 = vmul.f32 %v84, %v84
    %v86 = vrot.slane %v85, 4
    %v87 = vadd.f32 %v85, %v86
    %v88 = vrot.slane %v87, 2
    %v89 = vadd.f32 %v87, %v88
    %v90 = vrot.slane %v89, 1
    %v91 = vadd.f32 %v89, %v90
    %v92 = vrsqrt.pop %v91
    %v93 = vmul.f32 %v92, %v91
    %v94 = vmul.f32 %v93, %v92
    %v95 = vmul.f32 0.5, %v94
    %v96 = vsub.f32 1.5, %v95
    %v97 = vmul.f32 %v92, %v96
    %v98 = vmul.f32 %v91, %v97
    %vm99 = vcmp.eq.f32.partialorder %v91, inf
    %v100 = vsel %vm99, %v91, %v98
    %vm101 = vcmp.eq.f32.partialorder %v91, 0.0
    %v102 = vand.u32 %v91, 2147483648
    %v103 = vsel %vm101, %v102, %v100
    %v104 = vrsqrt.pop %v103
    %v105 = vmul.f32 %v104, %v103
    %v106 = vmul.f32 %v105, %v104
    %v107 = vmul.f32 0.5, %v106
    %v108 = vsub.f32 1.5, %v107
    %v109 = vmul.f32 %v104, %v108
    %v110 = vmul.f32 %v103, %v109
    %vm111 = vcmp.eq.f32.partialorder %v103, inf
    %v112 = vsel %vm111, %v103, %v110
    %vm113 = vcmp.eq.f32.partialorder %v103, 0.0
    %v114 = vand.u32 %v103, 2147483648
    %v115 = vsel %vm113, %v114, %v112
    %v116 = vmax.f32 %v115, 1e-12
    %v117 = vrcp.pop %v116
    %v118 = vmul.f32 %v82, %v117
    %v119 = vrot.slane %v118, 4
    %v120 = vmax.f32 %v118, %v119
    %v121 = vrot.slane %v120, 2
    %v122 = vmax.f32 %v120, %v121
    %v123 = vrot.slane %v122, 1
    %v124 = vmax.f32 %v122, %v123
    %v125 = vsub.f32 %v118, %v124
    %v126 = vmul.f32 %v125, 1.442695
    %v127 = vpow.pop %v126
    %v128 = vrot.slane %v127, 4
    %v129 = vadd.f32 %v127, %v128
    %v130 = vrot.slane %v129, 2
    %v131 = vadd.f32 %v129, %v130
    %v132 = vrot.slane %v131, 1
    %v133 = vadd.f32 %v131, %v132
    %v134 = vrcp.pop %v133
    %v135 = vmul.f32 %v127, %v134
    %v137 = vsel %vm60, %v58, 0
    %139 = vmatpush.msra.mxu0 0.0
    %140 = vmatpush.msra.mxu0 0.0
    %141 = vmatpush.msra.mxu0 0.0
    %142 = vmatpush.msra.mxu0 0.0
    %143 = vmatpush.msra.mxu0 0.0
    %144 = vmatpush.msra.mxu0 0.0
    %145 = vmatpush.msra.mxu0 0.0
    %146 = vmatpush.msra.mxu0 0.0
    %147 = vmatpush.msra.mxu0 0.0
    %148 = vmatpush.msra.mxu0 0.0
    %149 = vmatpush.msra.mxu0 0.0
    %150 = vmatpush.msra.mxu0 0.0
    %151 = vmatpush.msra.mxu0 %v56
    %152 = vmatpush.msra.mxu0 %v55
    %153 = vmatpush.msra.mxu0 %v54
    %154 = vmatpush.msra.mxu0 %v53
    %155 = vmatmul.f32.gmra.mxu0 %v137
    %v156 = vpop.f32.mrf.mxu0
    %v157 = vadd.f32 0.0, %v156
    %158 = vdwg.mxu0
    %v159 = vmul.f32 %v157, 1.442695
    %v160 = vpow.pop %v159
    %vm161 = vcmask 64512
    %v163 = vsel %vm161, %v57, 0
    %165 = vmatpush.msra.mxu0 0.0
    %166 = vmatpush.msra.mxu0 0.0
    %167 = vmatpush.msra.mxu0 0.0
    %168 = vmatpush.msra.mxu0 0.0
    %169 = vmatpush.msra.mxu0 0.0
    %170 = vmatpush.msra.mxu0 0.0
    %171 = vmatpush.msra.mxu0 0.0
    %172 = vmatpush.msra.mxu0 0.0
    %173 = vmatpush.msra.mxu0 0.0
    %174 = vmatpush.msra.mxu0 0.0
    %175 = vmatpush.msra.mxu0 0.0
    %176 = vmatpush.msra.mxu0 0.0
    %177 = vmatpush.msra.mxu0 0.0
    %178 = vmatpush.msra.mxu0 0.0
    %179 = vmatpush.msra.mxu0 0.0
    %180 = vmatpush.msra.mxu0 %v135
    %181 = vmatmul.f32.gmra.mxu0 %v163
    %v182 = vpop.f32.mrf.mxu0
    %v183 = vadd.f32 0.0, %v182
    %184 = vdwg.mxu0
    %v185 = vmul.f32 %v160, %v183
    %vm186 = vcmask 1041408
    %v187 = vsel %vm186, %v185, 0.0
    %v188 = vrot.slane %v187, 4
    %v189 = vadd.f32 %v187, %v188
    %v190 = vrot.slane %v189, 2
    %v191 = vadd.f32 %v189, %v190
    %v192 = vrot.slane %v191, 1
    %v193 = vadd.f32 %v191, %v192
    %v194 = vstv %s59
    %v195 = vadd.f32 %v193, %v194
    %196 = vst [vmem:[#allocation8] sm:$0x1] %v195
    // Predicated region
    $region30: #{tpu_custom_call.1} parent=1 // pred_check
      _
    $region31: #{tpu_custom_call.1} parent=1 // pred_check_branch
      %198 = sbr.rel (0) target = $region33
    $region32: #{tpu_custom_call.1} parent=1 // pred_region
      %200 = vsyncadd [#allocation5], 0
      %s202 = sshll.u32 [#allocation8], 4
      %s203 = int_to_ptr.vmem [resolvable:$true] %s202
      %s204 = sshll.u32 %s5, 4
      %s205 = int_to_ptr.hbm [resolvable:$true] %s204
      %207 = dma.vmem_to_hbm [thread:$0]  %s203, 16, %s205, [#allocation5]
    $region33: #{tpu_custom_call.1} parent=1 // pred_fallthru
      _
    // Predicated region
    $region34: #{tpu_custom_call.1} parent=1 // pred_check
      _
    $region35: #{tpu_custom_call.1} parent=1 // pred_check_branch
      %209 = sbr.rel (0) target = $region37
    $region36: #{tpu_custom_call.1} parent=1 // pred_region
      %211 = dma.done [#allocation5], 16
    $region37: #{tpu_custom_call.1} parent=1 // pred_fallthru
      _
    %212 = vsyncpa [#allocation4], 1
    %213 = vsyncpa [#allocation7], 1
    %214 = vsyncpa [#allocation5], 1

</llo_original>
